<compile_context>
chip_gen: v7x
topology: tpu7x:2x2x1
jax: 0.10.0
libtpu: 0.0.40
codegen_flags: <defaults>
</compile_context>

<pallas_src>
import numpy as np
import jax
import jax.numpy as jnp
from jax.experimental import pallas as pl
from jax.experimental.pallas import tpu as pltpu

K = 7        # conv kernel size
PAD = 3      # conv padding


# --------------------------- per-generation config ---------------------------

def _hw_config():
    """(scoped-VMEM request, stage-1 per-buffer block budget, multi-core?)."""
    try:
        kind = jax.devices()[0].device_kind.lower()
    except Exception:
        kind = ""
    if "v7" in kind or "7x" in kind:
        # 64 MiB VMEM per TensorCore, 2 TCs per chip -> keep the total request
        # well under 64 MiB and make sure both cores get grid iterations.
        return 48 * 2**20, 10 * 2**20, True
    if "v6" in kind:
        # 128 MiB VMEM, 1 TC: grow blocks to amortize the ~0.35 us/step cost.
        return 64 * 2**20, 14 * 2**20, False
    if "v5" in kind:
        # ~820 GB/s HBM: a few-MiB block already hides per-step overhead, but
        # the default scoped limit (16 MiB) is too small -> request 32 MiB.
        return 32 * 2**20, 6 * 2**20, False
    return 32 * 2**20, 8 * 2**20, False


# ----------------------------- stage 1: reduction ----------------------------

def _reduce_kernel(x_ref, sum_ref, max_ref):
    # x_ref: (bn, c_tile, hw_tile) lane-dense channel tile.
    # sum_ref / max_ref: (bn, 1, hw_tile), resident across the channel grid
    # axis (accumulators: same block index for every c).
    c = pl.program_id(2)

    @pl.when(c == 0)
    def _():
        sum_ref[...] = jnp.zeros_like(sum_ref)
        max_ref[...] = jnp.full_like(max_ref, -jnp.inf)

    xt = x_ref[...].astype(jnp.float32)                       # upcast once
    sum_ref[...] += jnp.sum(xt, axis=1, keepdims=True)
    max_ref[...] = jnp.maximum(max_ref[...], jnp.max(xt, axis=1, keepdims=True))


# ----------------------------- stage 2: 7x7 conv -----------------------------

def _conv_kernel(w_ref, b_ref, sp_ref, mp_ref, o_ref, spad_ref, mpad_ref):
    # sp_ref / mp_ref: (bn, H, W) unpadded channel-sum / channel-max maps.
    # spad_ref / mpad_ref: (bn, H+6, W+6) VMEM scratch (padding fused here).
    # w_ref: (2*49,) SMEM scalars; avg-channel taps are already divided by C.
    bn, h, w = sp_ref.shape

    spad_ref[...] = jnp.zeros_like(spad_ref)
    mpad_ref[...] = jnp.zeros_like(mpad_ref)
    spad_ref[:, PAD:PAD + h, PAD:PAD + w] = sp_ref[...]
    mpad_ref[:, PAD:PAD + h, PAD:PAD + w] = mp_ref[...]

    sp = spad_ref[...]
    mp = mpad_ref[...]
    # Hoist the lane-direction (kw) shifts out of the kh loop: materialize the
    # 7 shifted views of each map once, then only take cheap sublane (kh)
    # slices inside the loop.
    sp_w = [sp[:, :, kw:kw + w] for kw in range(K)]
    mp_w = [mp[:, :, kw:kw + w] for kw in range(K)]

    acc = jnp.full((bn, h, w), b_ref[0], dtype=jnp.float32)
    for kh in range(K):
        for kw in range(K):
            wa = w_ref[kh * K + kw]              # avg-channel tap (already /C)
            wm = w_ref[K * K + kh * K + kw]      # max-channel tap
            acc = acc + wa * sp_w[kw][:, kh:kh + h, :] \
                      + wm * mp_w[kw][:, kh:kh + h, :]
    # TODO(synk): output store is W lanes wide (masked if W < 128); volume is
    # only N*H*W so it is negligible, a lane-dense (N, H*W) store would need
    # an in-kernel relayout.
    o_ref[...] = jax.nn.sigmoid(acc).astype(o_ref.dtype)


# -------------------------------- tile pickers --------------------------------

def _choose_reduce_tiles(N, C, HW, itemsize, budget, multi_core):
    """Pick (bn, hw_tile, c_tile) for the stage-1 block (bn, c_tile, hw_tile)."""
    align = max(8, 32 // itemsize)      # sublane packing minimum: 8/16/32
    c_opts = sorted({C} | {d for d in range(align, C, align) if C % d == 0},
                    reverse=True)
    hw_opts = {HW}
    if HW % 128 == 0:
        hw_opts |= {d for d in range(128, HW, 128) if HW % d == 0}
    hw_opts = sorted(hw_opts, reverse=True)
    n_opts = sorted((d for d in range(1, N + 1) if N % d == 0), reverse=True)

    best_key, best = None, None
    for c in c_opts:
        for hw in hw_opts:
            for bn in n_opts:
                if bn * c * hw * itemsize > budget:
                    continue
                # On multi-TC chips prefer tilings whose parallel grid axes
                # have >= 2 iterations so both cores get work.
                par_ok = (not multi_core) or ((N // bn) * (HW // hw) >= 2)
                key = (par_ok, bn * c * hw, hw, c)
                if best_key is None or key > best_key:
                    best_key, best = key, (bn, hw, c)
                if par_ok:
                    break   # smaller bn can't beat this key for (c, hw)
    if best is None:
        # Nothing fits the budget: take the smallest legal block (still
        # correct; the VMEM request below is raised to cover it).
        best = (1, min(hw_opts), min(c_opts))
    return best


def _pick_bn_conv(N, H, W, out_itemsize, budget, multi_core):
    Hp, Wp = H + 2 * PAD, W + 2 * PAD
    per_n = (2 * 2 * H * W * 4          # two f32 input maps, double-buffered
             + 2 * Hp * Wp * 4          # two padded VMEM scratch buffers
             + 2 * H * W * out_itemsize)  # output, double-buffered
    cap = max(1, budget // per_n)
    divs = sorted((d for d in range(1, N + 1) if N % d == 0), reverse=True)
    if multi_core and N >= 2:
        divs = [d for d in divs if d <= N // 2] or [1]
    for d in divs:
        if d <= cap:
            return d
    return 1


# ---------------------------------- wrapper -----------------------------------

def spatial_attention(x, weight, bias, *, c_tile=None, hw_tile=None,
                      bn_reduce=None, bn_conv=None):
    """x: (N, C, H, W); weight: (1, 2, 7, 7); bias: (1,).  Returns (N, 1, H, W)."""
    N, C, H, W = x.shape
    HW = H * W
    Hp, Wp = H + 2 * PAD, W + 2 * PAD
    itemsize = jnp.dtype(x.dtype).itemsize

    vmem_limit, block_budget, multi_core = _hw_config()

    auto_bn, auto_hw, auto_c = _choose_reduce_tiles(
        N, C, HW, itemsize, block_budget, multi_core)
    if bn_reduce is None:
        bn_reduce = auto_bn
    if hw_tile is None:
        hw_tile = auto_hw
    if c_tile is None:
        c_tile = auto_c

    align = max(8, 32 // itemsize)
    assert N % bn_reduce == 0, (N, bn_reduce)
    assert C % c_tile == 0 and (c_tile == C or c_tile % align == 0), (C, c_tile)
    assert HW % hw_tile == 0 and (hw_tile == HW or hw_tile % 128 == 0), (HW, hw_tile)

    if bn_conv is None:
        bn_conv = _pick_bn_conv(N, H, W, itemsize, 4 * 2**20, multi_core)
    assert N % bn_conv == 0, (N, bn_conv)

    # Scoped-VMEM requests: per-generation default, raised if a pathological
    # shape forced a bigger-than-budget block.
    in_blk = bn_reduce * c_tile * hw_tile * itemsize
    out_blk = bn_reduce * hw_tile * 4
    vmem1 = max(vmem_limit, 2 * in_blk + 4 * out_blk + (2 << 20))
    conv_blk = bn_conv * (2 * 2 * HW * 4 + 2 * Hp * Wp * 4 + 2 * HW * itemsize)
    vmem2 = max(16 * 2**20, conv_blk + (2 << 20))

    # ---- stage 1: lane-dense channel sum / max over (N, C, H*W) ------------
    x2 = x.reshape(N, C, HW)          # contiguous reshape, no data movement
    sum_map, max_map = pl.pallas_call(
        _reduce_kernel,
        out_shape=(jax.ShapeDtypeStruct((N, 1, HW), jnp.float32),
                   jax.ShapeDtypeStruct((N, 1, HW), jnp.float32)),
        grid_spec=pltpu.PrefetchScalarGridSpec(
            num_scalar_prefetch=0,
            grid=(N // bn_reduce, HW // hw_tile, C // c_tile),
            in_specs=[pl.BlockSpec((bn_reduce, c_tile, hw_tile),
                                   lambda n, hw, c: (n, c, hw))],
            out_specs=[pl.BlockSpec((bn_reduce, 1, hw_tile),
                                    lambda n, hw, c: (n, 0, hw)),
                       pl.BlockSpec((bn_reduce, 1, hw_tile),
                                    lambda n, hw, c: (n, 0, hw))],
        ),
        compiler_params=pltpu.CompilerParams(
            dimension_semantics=("parallel", "parallel", "arbitrary"),
            vmem_limit_bytes=vmem1),
    )(x2)

    # ---- conv parameters: fold 1/C into the avg-channel taps ---------------
    w = weight.astype(jnp.float32)
    w_flat = jnp.concatenate([w[0, 0].reshape(-1) / C, w[0, 1].reshape(-1)])  # (98,)
    b = bias.astype(jnp.float32)                                              # (1,)

    # ---- stage 2: 7x7 conv + bias + sigmoid (padding fused in-kernel) ------
    out = pl.pallas_call(
        _conv_kernel,
        out_shape=jax.ShapeDtypeStruct((N, H, W), x.dtype),
        grid_spec=pltpu.PrefetchScalarGridSpec(
            num_scalar_prefetch=0,
            grid=(N // bn_conv,),
            in_specs=[pl.BlockSpec(memory_space=pltpu.MemorySpace.SMEM),   # weights
                      pl.BlockSpec(memory_space=pltpu.MemorySpace.SMEM),   # bias
                      pl.BlockSpec((bn_conv, H, W), lambda n: (n, 0, 0)),
                      pl.BlockSpec((bn_conv, H, W), lambda n: (n, 0, 0))],
            out_specs=pl.BlockSpec((bn_conv, H, W), lambda n: (n, 0, 0)),
            scratch_shapes=[pltpu.VMEM((bn_conv, Hp, Wp), jnp.float32),
                            pltpu.VMEM((bn_conv, Hp, Wp), jnp.float32)]),
        compiler_params=pltpu.CompilerParams(
            dimension_semantics=("parallel",),
            vmem_limit_bytes=vmem2),
    )(w_flat, b, sum_map.reshape(N, H, W), max_map.reshape(N, H, W))

    return out.reshape(N, 1, H, W)


# --------------------------------- reference ----------------------------------

def _reference(x, weight, bias):
    avg = jnp.mean(x, axis=1, keepdims=True)
    mx = jnp.max(x, axis=1, keepdims=True)
    feat = jnp.concatenate([avg, mx], axis=1)
    out = jax.lax.conv_general_dilated(
        feat, weight, window_strides=(1, 1),
        padding=((PAD, PAD), (PAD, PAD)),
        dimension_numbers=("NCHW", "OIHW", "NCHW"))
    return jax.nn.sigmoid(out + bias.reshape(1, -1, 1, 1))


if __name__ == "__main__":
    key = jax.random.PRNGKey(0)
    kx, kw_, kb, kx2, kx3 = jax.random.split(key, 5)

    N, C, H, W = 2, 4, 16, 16
    x = jax.random.normal(kx, (N, C, H, W), dtype=jnp.float32)
    weight = 0.1 * jax.random.normal(kw_, (1, 2, K, K), dtype=jnp.float32)
    bias = 0.05 * jax.random.normal(kb, (1,), dtype=jnp.float32)

    out = jax.block_until_ready(spatial_attention(x, weight, bias))
    ref = jax.block_until_ready(_reference(x, weight, bias))
    assert out.shape == (N, 1, H, W)
    assert np.allclose(np.asarray(out), np.asarray(ref), atol=2e-5, rtol=1e-5)

    # Exercise the C- and HW-tiled accumulation path (3-D grid, >1 step on
    # both the channel reduction axis and the spatial parallel axis).
    x_big = jax.random.normal(kx2, (2, 16, H, W), dtype=jnp.float32)
    out2 = jax.block_until_ready(spatial_attention(
        x_big, weight, bias, c_tile=8, hw_tile=128, bn_reduce=1, bn_conv=1))
    ref2 = jax.block_until_ready(_reference(x_big, weight, bias))
    assert np.allclose(np.asarray(out2), np.asarray(ref2), atol=2e-5, rtol=1e-5)

    # bf16 activations: exercises the dtype-aware sublane alignment
    # (c_tile must be a multiple of 16 for bf16) and halved HBM traffic.
    x_bf = jax.random.normal(kx3, (2, 32, H, W), dtype=jnp.float32).astype(jnp.bfloat16)
    out3 = jax.block_until_ready(spatial_attention(x_bf, weight, bias, c_tile=16))
    ref3 = jax.block_until_ready(_reference(x_bf.astype(jnp.float32), weight, bias))
    assert np.allclose(np.asarray(out3.astype(jnp.float32)), np.asarray(ref3),
                       atol=1e-2, rtol=1e-2)

    print("KERNEL_OK")
</pallas_src>

<mosaic_0001>
module attributes {stable_mosaic.version = 11 : i64} {
  func.func @_reduce_kernel(%arg0: i32, %arg1: i32, %arg2: i32, %arg3: memref<2x4x256xf32, #tpu.memory_space<vmem>>, %arg4: memref<2x1x256xf32, #tpu.memory_space<vmem>>, %arg5: memref<2x1x256xf32, #tpu.memory_space<vmem>>) attributes {dimension_semantics = [#tpu.dimension_semantics<parallel>, #tpu.dimension_semantics<parallel>, #tpu.dimension_semantics<arbitrary>], iteration_bounds = array<i64: 1, 1, 1>, scalar_prefetch = 0 : i64, scratch_operands = 0 : i64, tpu.core_type = #tpu.core_type<tc>, window_params = [{transform_indices = @transform_0, window_bounds = array<i64: 2, 4, 256>}, {transform_indices = @transform_1, window_bounds = array<i64: 2, 1, 256>}, {transform_indices = @transform_2, window_bounds = array<i64: 2, 1, 256>}]} {
    %c0_i32 = arith.constant 0 : i32
    %0 = arith.cmpi eq, %arg2, %c0_i32 : i32
    %1 = arith.extui %0 : i1 to i32
    %c0_i32_0 = arith.constant 0 : i32
    %2 = arith.cmpi ne, %1, %c0_i32_0 : i32
    scf.if %2 {
      %cst_16 = arith.constant 0.000000e+00 : f32
      %14 = vector.broadcast %cst_16 : f32 to vector<2x1x256xf32>
      %c0_17 = arith.constant 0 : index
      %c0_18 = arith.constant 0 : index
      %c0_19 = arith.constant 0 : index
      %15 = vector.load %arg4[%c0_17, %c0_18, %c0_19] : memref<2x1x256xf32, #tpu.memory_space<vmem>>, vector<2x1x256xf32>
      tpu.vector_store %arg4[%c0_17, %c0_18, %c0_19], %14 {strides = array<i32>} : memref<2x1x256xf32, #tpu.memory_space<vmem>>, vector<2x1x256xf32>,
      %cst_20 = arith.constant 0xFF800000 : f32
      %16 = vector.broadcast %cst_20 : f32 to vector<2x1x256xf32>
      %c0_21 = arith.constant 0 : index
      %c0_22 = arith.constant 0 : index
      %c0_23 = arith.constant 0 : index
      %17 = vector.load %arg5[%c0_21, %c0_22, %c0_23] : memref<2x1x256xf32, #tpu.memory_space<vmem>>, vector<2x1x256xf32>
      tpu.vector_store %arg5[%c0_21, %c0_22, %c0_23], %16 {strides = array<i32>} : memref<2x1x256xf32, #tpu.memory_space<vmem>>, vector<2x1x256xf32>,
    } else {
    }
    %c0 = arith.constant 0 : index
    %c0_1 = arith.constant 0 : index
    %c0_2 = arith.constant 0 : index
    %3 = vector.load %arg3[%c0, %c0_1, %c0_2] : memref<2x4x256xf32, #tpu.memory_space<vmem>>, vector<2x4x256xf32>
    %c0_3 = arith.constant 0 : index
    %c0_4 = arith.constant 0 : index
    %c0_5 = arith.constant 0 : index
    %4 = vector.load %arg4[%c0_3, %c0_4, %c0_5] : memref<2x1x256xf32, #tpu.memory_space<vmem>>, vector<2x1x256xf32>
    %cst = arith.constant dense<0.000000e+00> : vector<2x256xf32>
    %5 = vector.multi_reduction <add>, %3, %cst [1] : vector<2x4x256xf32> to vector<2x256xf32>
    %6 = vector.shape_cast %5 : vector<2x256xf32> to vector<2x1x256xf32>
    %7 = arith.addf %4, %6 : vector<2x1x256xf32>
    %c0_6 = arith.constant 0 : index
    %c0_7 = arith.constant 0 : index
    %c0_8 = arith.constant 0 : index
    %8 = vector.load %arg4[%c0_6, %c0_7, %c0_8] : memref<2x1x256xf32, #tpu.memory_space<vmem>>, vector<2x1x256xf32>
    tpu.vector_store %arg4[%c0_6, %c0_7, %c0_8], %7 {strides = array<i32>} : memref<2x1x256xf32, #tpu.memory_space<vmem>>, vector<2x1x256xf32>,
    %c0_9 = arith.constant 0 : index
    %c0_10 = arith.constant 0 : index
    %c0_11 = arith.constant 0 : index
    %9 = vector.load %arg5[%c0_9, %c0_10, %c0_11] : memref<2x1x256xf32, #tpu.memory_space<vmem>>, vector<2x1x256xf32>
    %cst_12 = arith.constant dense<0xFF800000> : vector<2x256xf32>
    %10 = vector.multi_reduction <maximumf>, %3, %cst_12 [1] : vector<2x4x256xf32> to vector<2x256xf32>
    %11 = vector.shape_cast %10 : vector<2x256xf32> to vector<2x1x256xf32>
    %12 = arith.maximumf %9, %11 : vector<2x1x256xf32>
    %c0_13 = arith.constant 0 : index
    %c0_14 = arith.constant 0 : index
    %c0_15 = arith.constant 0 : index
    %13 = vector.load %arg5[%c0_13, %c0_14, %c0_15] : memref<2x1x256xf32, #tpu.memory_space<vmem>>, vector<2x1x256xf32>
    tpu.vector_store %arg5[%c0_13, %c0_14, %c0_15], %12 {strides = array<i32>} : memref<2x1x256xf32, #tpu.memory_space<vmem>>, vector<2x1x256xf32>,
    return
  }
  func.func @transform_0(%arg0: i32, %arg1: i32, %arg2: i32) -> (i32, i32, i32) {
    %c0_i32 = arith.constant 0 : i32
    return %arg0, %arg2, %arg1 : i32, i32, i32
  }
  func.func @transform_1(%arg0: i32, %arg1: i32, %arg2: i32) -> (i32, i32, i32) {
    %c0_i32 = arith.constant 0 : i32
    %c0_i32_0 = arith.constant 0 : i32
    return %arg0, %c0_i32, %arg1 : i32, i32, i32
  }
  func.func @transform_2(%arg0: i32, %arg1: i32, %arg2: i32) -> (i32, i32, i32) {
    %c0_i32 = arith.constant 0 : i32
    %c0_i32_0 = arith.constant 0 : i32
    return %arg0, %c0_i32, %arg1 : i32, i32, i32
  }
}

</mosaic_0001>

<llo_original>
// kernel: tpu_custom_call.1
$region0: #{tpu_custom_call.1}
  #allocation0 [shape = 'u32[]', space=smem, size = 0x4, offset = 0x4, fixed_abs, tag = 'smem constant byte address 0x4 - core index']
  #allocation1 [shape = 'u32[144,128]{1,0:T(1,128)}', space=vmem, size = 0x12000, scoped, tag = 'internal scratch']
  %s0 = inlined_call_operand.hbm [shape: f32[2,4,256], index: 0, kind: input, shape index: {}]
  %s1 = inlined_call_operand.hbm [shape: f32[2,1,256], index: 1, kind: output, shape index: {0}]
  %s2 = inlined_call_operand.hbm [shape: f32[2,1,256], index: 2, kind: output, shape index: {1}]
  %3 = xla_tuple %s1, %s2
  %s4 = sld [smem:[#allocation0]]
  $region30: #{tpu_custom_call.1} parent=0
    _
  %s6 = ssub.s32 1, %s4
  %s7 = scalar_select 0, %s6, %s4
  $region1: #{tpu_custom_call.1} parent=0
    #allocation2 [shape = 'u8[8192]{0}', space=vmem, size = 0x2000, scoped, tag = 'input window, operand 0, single buffered']
    #allocation3 [shape = 's32[1]{0}', space=sflag, size = 0x4, scoped, tag = 'scoped memory for tpu_custom_call.1']
    #allocation4 [shape = 's32[1]{0}', space=sflag, size = 0x4, scoped, tag = 'scoped memory for tpu_custom_call.1']
    #allocation5 [shape = 'u8[2048]{0}', space=vmem, size = 0x800, scoped, tag = 'output window, operand 0, single buffered']
    #allocation6 [shape = 'u8[2048]{0}', space=vmem, size = 0x800, scoped, tag = 'output window, operand 1, single buffered']
    #allocation7 [shape = 's32[1]{0}', space=sflag, size = 0x4, scoped, tag = 'scoped memory for tpu_custom_call.1']
    %8 = vsyncpa [#allocation3], 0
    %9 = vsyncpa [#allocation4], 0
    %10 = vsyncpa [#allocation7], 0
    // Predicated region
    $region2: #{tpu_custom_call.1} parent=1 // pred_check
      _
    $region3: #{tpu_custom_call.1} parent=1 // pred_check_branch
      %12 = sbr.rel (0) target = $region5
    $region4: #{tpu_custom_call.1} parent=1 // pred_region
      %s14 = ssub.s32 256, 256
      %15 = vsyncadd [#allocation3], %s14
      %s16 = sshll.u32 [#allocation2], 4
      %s17 = int_to_ptr.vmem [resolvable:$true] %s16
      %22 = dma.hbm_to_vmem [thread:$0]  %s0, 256, %s17, [#allocation3], 128, 128, 8
    $region5: #{tpu_custom_call.1} parent=1 // pred_fallthru
      _
    // Predicated region
    $region6: #{tpu_custom_call.1} parent=1 // pred_check
      _
    $region7: #{tpu_custom_call.1} parent=1 // pred_check_branch
      %24 = sbr.rel (0) target = $region9
    $region8: #{tpu_custom_call.1} parent=1 // pred_region
      %25 = dma.done [#allocation3], 256
    $region9: #{tpu_custom_call.1} parent=1 // pred_fallthru
      _
    %p26 = scmp.eq.s32.totalorder 0, 0
    // Predicated region
    $region10: #{tpu_custom_call.1} parent=1 // pred_check
      %p27 = pneg %p26
    $region11: #{tpu_custom_call.1} parent=1 // pred_check_branch
      %29 = sbr.rel (%p27) target = $region13
    $region12: #{tpu_custom_call.1} parent=1 // pred_region
      %v30 = vlaneseq
      %vm31 = vcmp.ge.s32.totalorder %v30, 0
      %vm32 = vcmp.lt.s32.totalorder %v30, 256
      %vm33 = vmand %vm31, %vm32
      %34 = vst.msk [vmem:[#allocation5] sm:$0x3] %vm33, 0.0
      %35 = vst.msk [vmem:[#allocation5 + $0x2] sm:$0x3] %vm33, 0.0
      %36 = vst.msk [vmem:[#allocation6] sm:$0x3] %vm33, -inf
      %37 = vst.msk [vmem:[#allocation6 + $0x2] sm:$0x3] %vm33, -inf
    $region13: #{tpu_custom_call.1} parent=1 // pred_fallthru
      _
    %v38 = vld [vmem:[#allocation2] sm:$0xff]
    %v39 = vld [vmem:[#allocation2 + $0x8] sm:$0xff]
    %v40 = vld [vmem:[#allocation5] sm:$0x3]
    %v41 = vld [vmem:[#allocation5 + $0x2] sm:$0x3]
    %v44 = vcombine.high %v38, %v38
    %v45 = vcombine.high %v39, %v39
    %vm48 = vcmask 1043456
    %v49 = vsel %vm48, %v38, 0.0
    %v50 = vrot.slane %v49, 4
    %v51 = vadd.f32 %v49, %v50
    %v52 = vrot.slane %v51, 2
    %v53 = vadd.f32 %v51, %v52
    %v54 = vrot.slane %v53, 1
    %v55 = vadd.f32 %v53, %v54
    %v56 = vsel %vm48, %v44, 0.0
    %v57 = vrot.slane %v56, 4
    %v58 = vadd.f32 %v56, %v57
    %v59 = vrot.slane %v58, 2
    %v60 = vadd.f32 %v58, %v59
    %v61 = vrot.slane %v60, 1
    %v62 = vadd.f32 %v60, %v61
    %v63 = vsel %vm48, %v39, 0.0
    %v64 = vrot.slane %v63, 4
    %v65 = vadd.f32 %v63, %v64
    %v66 = vrot.slane %v65, 2
    %v67 = vadd.f32 %v65, %v66
    %v68 = vrot.slane %v67, 1
    %v69 = vadd.f32 %v67, %v68
    %v70 = vsel %vm48, %v45, 0.0
    %v71 = vrot.slane %v70, 4
    %v72 = vadd.f32 %v70, %v71
    %v73 = vrot.slane %v72, 2
    %v74 = vadd.f32 %v72, %v73
    %v75 = vrot.slane %v74, 1
    %v76 = vadd.f32 %v74, %v75
    %v81 = vcombine.low %v55, %v62
    %v83 = vunpack.c.l.s4 1966171168
    %v84 = vunpack.c.0.s8 %v83
    %v85 = vlaneseq
    %v86 = vshrl.u32 %v85, 7
    %v87 = vsub.s32 %v84, %v86
    %v88 = vrot.slane %v81, %v87
    %v90 = vunpack.c.l.s4 1966171168
    %v91 = vunpack.c.0.s8 %v90
    %v92 = vlaneseq
    %v93 = vshrl.u32 %v92, 7
    %v94 = vsub.s32 %v91, %v93
    %v95 = vrot.slane %v88, %v94
    %v96 = vcombine.low %v69, %v76
    %v98 = vunpack.c.l.s4 1966171168
    %v99 = vunpack.c.0.s8 %v98
    %v100 = vlaneseq
    %v101 = vshrl.u32 %v100, 7
    %v102 = vsub.s32 %v99, %v101
    %v103 = vrot.slane %v96, %v102
    %v105 = vunpack.c.l.s4 1966171168
    %v106 = vunpack.c.0.s8 %v105
    %v107 = vlaneseq
    %v108 = vshrl.u32 %v107, 7
    %v109 = vsub.s32 %v106, %v108
    %v110 = vrot.slane %v103, %v109
    %v113 = vadd.f32 %v40, %v95
    %v114 = vadd.f32 %v41, %v110
    %v115 = vlaneseq
    %vm116 = vcmp.ge.s32.totalorder %v115, 0
    %vm117 = vcmp.lt.s32.totalorder %v115, 256
    %vm118 = vmand %vm116, %vm117
    %119 = vst.msk [vmem:[#allocation5] sm:$0x3] %vm118, %v113
    %120 = vst.msk [vmem:[#allocation5 + $0x2] sm:$0x3] %vm118, %v114
    %v121 = vld [vmem:[#allocation6] sm:$0x3]
    %v122 = vld [vmem:[#allocation6 + $0x2] sm:$0x3]
    %v123 = vsel %vm48, %v38, -inf
    %v124 = vrot.slane %v123, 4
    %v125 = vmax.f32 %v123, %v124
    %v126 = vrot.slane %v125, 2
    %v127 = vmax.f32 %v125, %v126
    %v128 = vrot.slane %v127, 1
    %v129 = vmax.f32 %v127, %v128
    %v130 = vsel %vm48, %v44, -inf
    %v131 = vrot.slane %v130, 4
    %v132 = vmax.f32 %v130, %v131
    %v133 = vrot.slane %v132, 2
    %v134 = vmax.f32 %v132, %v133
    %v135 = vrot.slane %v134, 1
    %v136 = vmax.f32 %v134, %v135
    %v137 = vsel %vm48, %v39, -inf
    %v138 = vrot.slane %v137, 4
    %v139 = vmax.f32 %v137, %v138
    %v140 = vrot.slane %v139, 2
    %v141 = vmax.f32 %v139, %v140
    %v142 = vrot.slane %v141, 1
    %v143 = vmax.f32 %v141, %v142
    %v144 = vsel %vm48, %v45, -inf
    %v145 = vrot.slane %v144, 4
    %v146 = vmax.f32 %v144, %v145
    %v147 = vrot.slane %v146, 2
    %v148 = vmax.f32 %v146, %v147
    %v149 = vrot.slane %v148, 1
    %v150 = vmax.f32 %v148, %v149
    %v155 = vcombine.low %v129, %v136
    %v157 = vunpack.c.l.s4 1966171168
    %v158 = vunpack.c.0.s8 %v157
    %v159 = vlaneseq
    %v160 = vshrl.u32 %v159, 7
    %v161 = vsub.s32 %v158, %v160
    %v162 = vrot.slane %v155, %v161
    %v164 = vunpack.c.l.s4 1966171168
    %v165 = vunpack.c.0.s8 %v164
    %v166 = vlaneseq
    %v167 = vshrl.u32 %v166, 7
    %v168 = vsub.s32 %v165, %v167
    %v169 = vrot.slane %v162, %v168
    %v170 = vcombine.low %v143, %v150
    %v172 = vunpack.c.l.s4 1966171168
    %v173 = vunpack.c.0.s8 %v172
    %v174 = vlaneseq
    %v175 = vshrl.u32 %v174, 7
    %v176 = vsub.s32 %v173, %v175
    %v177 = vrot.slane %v170, %v176
    %v179 = vunpack.c.l.s4 1966171168
    %v180 = vunpack.c.0.s8 %v179
    %v181 = vlaneseq
    %v182 = vshrl.u32 %v181, 7
    %v183 = vsub.s32 %v180, %v182
    %v184 = vrot.slane %v177, %v183
    %v187 = vmax.f32 %v121, %v169
    %v188 = vmax.f32 %v122, %v184
    %189 = vst.msk [vmem:[#allocation6] sm:$0x3] %vm118, %v187
    %190 = vst.msk [vmem:[#allocation6 + $0x2] sm:$0x3] %vm118, %v188
    // Predicated region
    $region14: #{tpu_custom_call.1} parent=1 // pred_check
      _
    $region15: #{tpu_custom_call.1} parent=1 // pred_check_branch
      %192 = sbr.rel (0) target = $region17
    $region16: #{tpu_custom_call.1} parent=1 // pred_region
      %s194 = ssub.s32 64, 64
      %195 = vsyncadd [#allocation4], %s194
      %s196 = sshll.u32 [#allocation5], 4
      %s197 = int_to_ptr.vmem [resolvable:$true] %s196
      %202 = dma.vmem_to_hbm [thread:$0]  %s197, 64, %s1, [#allocation4], 32, 32, 2
    $region17: #{tpu_custom_call.1} parent=1 // pred_fallthru
      _
    // Predicated region
    $region18: #{tpu_custom_call.1} parent=1 // pred_check
      _
    $region19: #{tpu_custom_call.1} parent=1 // pred_check_branch
      %204 = sbr.rel (0) target = $region21
    $region20: #{tpu_custom_call.1} parent=1 // pred_region
      %s206 = ssub.s32 64, 64
      %207 = vsyncadd [#allocation7], %s206
      %s208 = sshll.u32 [#allocation6], 4
      %s209 = int_to_ptr.vmem [resolvable:$true] %s208
      %214 = dma.vmem_to_hbm [thread:$0]  %s209, 64, %s2, [#allocation7], 32, 32, 2
    $region21: #{tpu_custom_call.1} parent=1 // pred_fallthru
      _
    // Predicated region
    $region22: #{tpu_custom_call.1} parent=1 // pred_check
      _
    $region23: #{tpu_custom_call.1} parent=1 // pred_check_branch
      %216 = sbr.rel (0) target = $region25
    $region24: #{tpu_custom_call.1} parent=1 // pred_region
      %217 = dma.done [#allocation4], 64
    $region25: #{tpu_custom_call.1} parent=1 // pred_fallthru
      _
    // Predicated region
    $region26: #{tpu_custom_call.1} parent=1 // pred_check
      _
    $region27: #{tpu_custom_call.1} parent=1 // pred_check_branch
      %219 = sbr.rel (0) target = $region29
    $region28: #{tpu_custom_call.1} parent=1 // pred_region
      %220 = dma.done [#allocation7], 64
    $region29: #{tpu_custom_call.1} parent=1 // pred_fallthru
      _
    %221 = vsyncpa [#allocation3], 1
    %222 = vsyncpa [#allocation4], 1
    %223 = vsyncpa [#allocation7], 1

</llo_original>
